<compile_context>
chip_gen: v7x
topology: tpu7x:2x2x1
jax: 0.10.0
libtpu: 0.0.40
codegen_flags: <defaults>
</compile_context>

<pallas_src>
import functools
import math

import jax
import jax.numpy as jnp
from jax import lax
from jax.experimental import pallas as pl
from jax.experimental.pallas import tpu as pltpu


def _round_up(x: int, m: int) -> int:
    return ((x + m - 1) // m) * m


def _vmem_capacity_bytes() -> int:
    try:
        cap = getattr(pltpu.get_tpu_info(), "vmem_capacity_bytes", None)
        if cap:
            return int(cap)
    except Exception:
        pass
    return 64 * 1024 * 1024          # conservative default (v7x per-core VMEM)


_VMEM_PHYS = _vmem_capacity_bytes()
_VMEM_LIMIT_BYTES = int(_VMEM_PHYS * 3 // 4)   # leave headroom for compiler scratch
_TILE_VMEM_BUDGET = int(_VMEM_PHYS // 3)       # budget used when picking tile sizes

_TRANS_B = (((1,), (1,)), ((), ()))            # x @ w.T with w in (out, in) layout


def _pick_block_rows(rows: int, d_in: int, d_out: int, itemsize: int,
                     resident_bytes: int) -> int:
    """Largest row tile fitting the VMEM budget (>=256 rows, multiple of 8)."""
    per_row = 2 * (d_in + d_out) * itemsize            # double-buffered in/out tiles
    avail = max(_TILE_VMEM_BUDGET - resident_bytes, 256 * per_row)
    bm = min(int(avail // per_row), 2048)
    bm = max(256, (bm // 8) * 8)
    return max(8, min(bm, _round_up(rows, 8)))


def _pick_block_cols(d_out: int, d_in: int, itemsize: int) -> int:
    """Column (d_out) tile: full width unless the weight tile would be huge."""
    if d_out <= 2048 or d_out % 256 != 0:
        return d_out
    target = max(256, (8 * 1024 * 1024) // max(1, d_in * itemsize))
    return max(256, min(d_out, (target // 256) * 256))


def _pick_query_tile(s_q: int, s_kv: int) -> int:
    """Query-row tile so the per-head f32 (S_qt, S_kv) score tile stays small."""
    if s_q % 8 != 0:
        return s_q                                      # full dim is always legal
    score_budget = max(_TILE_VMEM_BUDGET // 6, 8 * 4 * s_kv)
    max_rows = score_budget // (4 * s_kv)
    s_qt = min(s_q, 512, (max_rows // 8) * 8)
    return max(8, s_qt)


# ---------------------------------------------------------------------------
# Kernels
# ---------------------------------------------------------------------------
def _qkv_proj_kernel(x_ref, w_ref, b_ref, o_ref):
    # x_ref: (bm, D); w_ref: (1, D, D) current plane (out, in); b_ref: (1, 1, D)
    # o_ref: (1, bm, D) -> plane j of the (3, rows, D) output (plane order K, V, Q).
    acc = lax.dot_general(x_ref[...], w_ref[0], _TRANS_B,
                          preferred_element_type=jnp.float32)
    o_ref[0] = (acc + b_ref[0].astype(jnp.float32)).astype(o_ref.dtype)


def _linear_kernel(x_ref, w_ref, b_ref, o_ref):
    # y = x @ W.T + b with W kept in the nn.Linear (out, in) layout.
    acc = lax.dot_general(x_ref[...], w_ref[...], _TRANS_B,
                          preferred_element_type=jnp.float32)
    o_ref[...] = (acc + b_ref[...].astype(jnp.float32)).astype(o_ref.dtype)


def _attention_kernel(q_ref, kv_ref, o_ref, *, h, d_k, scale):
    # q_ref : (1, 1, S_qt, D)  query rows for this (batch, query-tile) grid step
    # kv_ref: (2, 1, S_kv, D)  plane 0 = K, plane 1 = V (resident per batch element)
    # o_ref : (1, S_qt, D)     lane-dense output slab (heads folded into the lane dim)
    for i in range(h):                                   # static unroll over heads
        lo, hi = i * d_k, (i + 1) * d_k
        q = q_ref[0, 0, :, lo:hi] * scale                # fold 1/sqrt(d_k) into Q
        k = kv_ref[0, 0, :, lo:hi]
        v = kv_ref[1, 0, :, lo:hi]
        # scores = (Q * scale) @ K^T, MXU in input dtype with f32 accumulation
        s = lax.dot_general(q, k, _TRANS_B, preferred_element_type=jnp.float32)
        s = s - jnp.max(s, axis=-1, keepdims=True)       # stable softmax
        p = jnp.exp(s)
        p = p * pl.reciprocal(jnp.sum(p, axis=-1, keepdims=True), approx=True)
        o = jnp.dot(p.astype(v.dtype), v, preferred_element_type=jnp.float32)
        o_ref[0, :, lo:hi] = o.astype(o_ref.dtype)


# ---------------------------------------------------------------------------
# Wrappers around pallas_call
# ---------------------------------------------------------------------------
def _fused_qkv_projection(x2, wq, wk, wv, bq, bk, bv):
    """x2: (rows, D).  Returns (3, rows, D) with plane order K, V, Q."""
    rows, d = x2.shape
    itemsize = jnp.dtype(x2.dtype).itemsize
    # NOTE: in real usage stack the weights/biases once outside the forward pass.
    w_stack = jnp.stack([wk, wv, wq])                     # (3, D, D), (out, in) layout
    b_stack = jnp.stack([bk, bv, bq]).reshape(3, 1, d)    # (3, 1, D)

    resident = 2 * (d * d + d) * itemsize                 # double-buffered weight plane
    bm = _pick_block_rows(rows, d, d, itemsize, resident)
    grid = (pl.cdiv(rows, bm), 3)

    return pl.pallas_call(
        _qkv_proj_kernel,
        out_shape=jax.ShapeDtypeStruct((3, rows, d), x2.dtype),
        grid=grid,
        in_specs=[
            pl.BlockSpec((bm, d), lambda i, j: (i, 0)),        # x tile, reused over j
            pl.BlockSpec((1, d, d), lambda i, j: (j, 0, 0)),   # weight plane j
            pl.BlockSpec((1, 1, d), lambda i, j: (j, 0, 0)),   # bias plane j
        ],
        out_specs=pl.BlockSpec((1, bm, d), lambda i, j: (j, i, 0)),
        compiler_params=pltpu.CompilerParams(
            dimension_semantics=("parallel", "parallel"),
            vmem_limit_bytes=_VMEM_LIMIT_BYTES),
        cost_estimate=pl.CostEstimate(
            flops=6 * rows * d * d,
            transcendentals=0,
            bytes_accessed=(4 * rows * d + 3 * d * d + 3 * d) * itemsize),
    )(x2, w_stack, b_stack)


def _linear(x2, w, b):
    """x2: (rows, d_in); w: (d_out, d_in) nn.Linear layout; b: (d_out,)."""
    rows, d_in = x2.shape
    d_out = w.shape[0]
    itemsize = jnp.dtype(x2.dtype).itemsize
    bn = _pick_block_cols(d_out, d_in, itemsize)
    resident = 2 * (bn * d_in + bn) * itemsize
    bm = _pick_block_rows(rows, d_in, bn, itemsize, resident)
    grid = (pl.cdiv(rows, bm), pl.cdiv(d_out, bn))

    return pl.pallas_call(
        _linear_kernel,
        out_shape=jax.ShapeDtypeStruct((rows, d_out), x2.dtype),
        grid=grid,
        in_specs=[
            pl.BlockSpec((bm, d_in), lambda i, j: (i, 0)),
            pl.BlockSpec((bn, d_in), lambda i, j: (j, 0)),
            pl.BlockSpec((1, bn), lambda i, j: (0, j)),
        ],
        out_specs=pl.BlockSpec((bm, bn), lambda i, j: (i, j)),
        compiler_params=pltpu.CompilerParams(
            dimension_semantics=("parallel", "parallel"),
            vmem_limit_bytes=_VMEM_LIMIT_BYTES),
        cost_estimate=pl.CostEstimate(
            flops=2 * rows * d_in * d_out,
            transcendentals=0,
            bytes_accessed=(rows * d_in + d_out * d_in + d_out + rows * d_out) * itemsize),
    )(x2, w, b.reshape(1, d_out))


def _attention(q_arr, kv_arr, q_plane, *, h, d_k, out_dtype):
    """q_arr: (Pq, B, S_q, D); kv_arr: (Pkv, B, S_kv, D) with planes 0/1 = K/V.
    Returns (B, S_q, D) with heads folded back into the lane dimension."""
    _, batch, s_q, d = q_arr.shape
    s_kv = kv_arr.shape[2]
    itemsize = jnp.dtype(out_dtype).itemsize
    s_qt = _pick_query_tile(s_q, s_kv)
    grid = (batch, pl.cdiv(s_q, s_qt))
    scale = 1.0 / math.sqrt(d_k)

    kernel = functools.partial(_attention_kernel, h=h, d_k=d_k, scale=scale)
    return pl.pallas_call(
        kernel,
        out_shape=jax.ShapeDtypeStruct((batch, s_q, d), out_dtype),
        grid=grid,
        in_specs=[
            pl.BlockSpec((1, 1, s_qt, d), lambda b, qi: (q_plane, b, qi, 0)),
            pl.BlockSpec((2, 1, s_kv, d), lambda b, qi: (0, b, 0, 0)),  # K/V resident
        ],
        out_specs=pl.BlockSpec((1, s_qt, d), lambda b, qi: (b, qi, 0)),
        compiler_params=pltpu.CompilerParams(
            dimension_semantics=("parallel", "parallel"),
            vmem_limit_bytes=_VMEM_LIMIT_BYTES),
        cost_estimate=pl.CostEstimate(
            flops=4 * batch * s_q * s_kv * d,
            transcendentals=batch * h * s_q * s_kv,
            bytes_accessed=(2 * batch * s_q * d + 2 * batch * s_kv * d) * itemsize),
    )(q_arr, kv_arr)


# ---------------------------------------------------------------------------
# Full MultiHeadAttentionBlock forward
# ---------------------------------------------------------------------------
def multi_head_attention_block(q, k, v, wq, bq, wk, bk, wv, bv, wo, bo, *, h, mask=None):
    if mask is not None:
        # TODO(synk): masked attention path not implemented in the Pallas kernels.
        raise NotImplementedError("mask is not supported by this Pallas kernel")

    batch, s_q, d = q.shape
    assert d % h == 0, "d_model must be divisible by h"
    d_k = d // h

    if (q is k) and (k is v):
        # Self-attention fast path: input read once, projections written plane-major
        # (K, V, Q) so the attention kernel picks Q/K/V via BlockSpec index_maps only.
        kvq = _fused_qkv_projection(q.reshape(batch * s_q, d), wq, wk, wv, bq, bk, bv)
        kvq = kvq.reshape(3, batch, s_q, d)
        attn = _attention(kvq, kvq, 2, h=h, d_k=d_k, out_dtype=q.dtype)
    else:
        # General (cross-attention) path: separate projections, K/V stacked into planes.
        s_kv = k.shape[1]
        q_p = _linear(q.reshape(batch * s_q, d), wq, bq).reshape(1, batch, s_q, d)
        k_p = _linear(k.reshape(batch * s_kv, d), wk, bk).reshape(batch, s_kv, d)
        v_p = _linear(v.reshape(batch * s_kv, d), wv, bv).reshape(batch, s_kv, d)
        kv = jnp.stack([k_p, v_p])                        # (2, B, S_kv, D)
        attn = _attention(q_p, kv, 0, h=h, d_k=d_k, out_dtype=q.dtype)

    # Dropout(p) on the attention probabilities is the identity in inference mode.
    out = _linear(attn.reshape(batch * s_q, d), wo, bo)
    return out.reshape(batch, s_q, d)


# ---------------------------------------------------------------------------
# Pure-JAX reference matching the PyTorch forward (mask=None, eval-mode dropout).
# ---------------------------------------------------------------------------
def _reference(q, k, v, wq, bq, wk, bk, wv, bv, wo, bo, *, h):
    B, S, D = q.shape
    d_k = D // h

    def lin(x, w, b):
        return x @ w.T + b

    def heads(t):
        return t.reshape(B, S, h, d_k).transpose(0, 2, 1, 3)

    Q, K, V = heads(lin(q, wq, bq)), heads(lin(k, wk, bk)), heads(lin(v, wv, bv))
    s = jnp.einsum("bhqd,bhkd->bhqk", Q, K) / jnp.sqrt(jnp.float32(d_k))
    p = jax.nn.softmax(s, axis=-1)
    o = jnp.einsum("bhqk,bhkd->bhqd", p, V)
    o = o.transpose(0, 2, 1, 3).reshape(B, S, D)
    return lin(o, wo, bo)


if __name__ == "__main__":
    key = jax.random.PRNGKey(0)
    batch, seq_len, d_model, h = 2, 8, 32, 4

    k_x, k_wq, k_bq, k_wk, k_bk, k_wv, k_bv, k_wo, k_bo = jax.random.split(key, 9)
    x = jax.random.normal(k_x, (batch, seq_len, d_model), dtype=jnp.float32)

    bound = 1.0 / math.sqrt(d_model)

    def init_linear(kw, kb):
        w = jax.random.uniform(kw, (d_model, d_model), jnp.float32, -bound, bound)
        b = jax.random.uniform(kb, (d_model,), jnp.float32, -bound, bound)
        return w, b

    wq, bq = init_linear(k_wq, k_bq)
    wk, bk = init_linear(k_wk, k_bk)
    wv, bv = init_linear(k_wv, k_bv)
    wo, bo = init_linear(k_wo, k_bo)

    out = multi_head_attention_block(x, x, x, wq, bq, wk, bk, wv, bv, wo, bo, h=h, mask=None)
    out = jax.block_until_ready(out)

    ref = _reference(x, x, x, wq, bq, wk, bk, wv, bv, wo, bo, h=h)
    assert out.shape == (batch, seq_len, d_model)
    # Tolerance accounts for the EUP approximate reciprocal in the softmax denominator.
    assert jnp.allclose(out, ref, atol=5e-3, rtol=5e-3), "mismatch vs reference"

    print("KERNEL_OK")
</pallas_src>

<mosaic_0001>
module attributes {stable_mosaic.version = 11 : i64} {
  func.func @_qkv_proj_kernel(%arg0: i32, %arg1: i32, %arg2: memref<16x32xf32, #tpu.memory_space<vmem>>, %arg3: memref<1x32x32xf32, #tpu.memory_space<vmem>>, %arg4: memref<1x1x32xf32, #tpu.memory_space<vmem>>, %arg5: memref<1x16x32xf32, #tpu.memory_space<vmem>>) attributes {dimension_semantics = [#tpu.dimension_semantics<parallel>, #tpu.dimension_semantics<parallel>], iteration_bounds = array<i64: 1, 3>, scalar_prefetch = 0 : i64, scratch_operands = 0 : i64, tpu.core_type = #tpu.core_type<tc>, window_params = [{transform_indices = @transform_0, window_bounds = array<i64: 16, 32>}, {transform_indices = @transform_1, window_bounds = array<i64: 1, 32, 32>}, {transform_indices = @transform_2, window_bounds = array<i64: 1, 1, 32>}, {transform_indices = @transform_3, window_bounds = array<i64: 1, 16, 32>}]} {
    %c0 = arith.constant 0 : index
    %c0_0 = arith.constant 0 : index
    %0 = vector.load %arg2[%c0, %c0_0] : memref<16x32xf32, #tpu.memory_space<vmem>>, vector<16x32xf32>
    %c0_1 = arith.constant 0 : index
    %c0_2 = arith.constant 0 : index
    %c0_3 = arith.constant 0 : index
    %1 = vector.load %arg3[%c0_1, %c0_2, %c0_3] : memref<1x32x32xf32, #tpu.memory_space<vmem>>, vector<1x32x32xf32>
    %2 = vector.shape_cast %1 : vector<1x32x32xf32> to vector<32x32xf32>
    %cst = arith.constant dense<0.000000e+00> : vector<16x32xf32>
    %3 = tpu.matmul %0, %2, %cst {dimension_numbers = #tpu.dot_dimension_numbers<[1], [1], [0], [0], [0, 0, 1, 0], [], []>} : vector<16x32xf32>, vector<32x32xf32>, vector<16x32xf32> -> vector<16x32xf32>
    %c0_4 = arith.constant 0 : index
    %c0_5 = arith.constant 0 : index
    %c0_6 = arith.constant 0 : index
    %4 = vector.load %arg4[%c0_4, %c0_5, %c0_6] : memref<1x1x32xf32, #tpu.memory_space<vmem>>, vector<1x1x32xf32>
    %5 = vector.shape_cast %4 : vector<1x1x32xf32> to vector<1x32xf32>
    %6 = vector.broadcast %5 : vector<1x32xf32> to vector<16x32xf32>
    %7 = arith.addf %3, %6 : vector<16x32xf32>
    %c0_7 = arith.constant 0 : index
    %c0_8 = arith.constant 0 : index
    %c0_9 = arith.constant 0 : index
    %8 = vector.load %arg5[%c0_7, %c0_8, %c0_9] : memref<1x16x32xf32, #tpu.memory_space<vmem>>, vector<1x16x32xf32>
    %9 = vector.shape_cast %8 : vector<1x16x32xf32> to vector<16x32xf32>
    %10 = vector.shape_cast %7 : vector<16x32xf32> to vector<1x16x32xf32>
    tpu.vector_store %arg5[%c0_7, %c0_8, %c0_9], %10 {strides = array<i32>} : memref<1x16x32xf32, #tpu.memory_space<vmem>>, vector<1x16x32xf32>,
    return
  }
  func.func @transform_0(%arg0: i32, %arg1: i32) -> (i32, i32) {
    %c0_i32 = arith.constant 0 : i32
    %c0_i32_0 = arith.constant 0 : i32
    return %arg0, %c0_i32 : i32, i32
  }
  func.func @transform_1(%arg0: i32, %arg1: i32) -> (i32, i32, i32) {
    %c0_i32 = arith.constant 0 : i32
    %c0_i32_0 = arith.constant 0 : i32
    %c0_i32_1 = arith.constant 0 : i32
    return %arg1, %c0_i32, %c0_i32_0 : i32, i32, i32
  }
  func.func @transform_2(%arg0: i32, %arg1: i32) -> (i32, i32, i32) {
    %c0_i32 = arith.constant 0 : i32
    %c0_i32_0 = arith.constant 0 : i32
    %c0_i32_1 = arith.constant 0 : i32
    return %arg1, %c0_i32, %c0_i32_0 : i32, i32, i32
  }
  func.func @transform_3(%arg0: i32, %arg1: i32) -> (i32, i32, i32) {
    %c0_i32 = arith.constant 0 : i32
    %c0_i32_0 = arith.constant 0 : i32
    return %arg1, %arg0, %c0_i32 : i32, i32, i32
  }
}

</mosaic_0001>

<llo_original>
// kernel: tpu_custom_call.1
$region0: #{tpu_custom_call.1}
  #allocation0 [shape = 'u32[]', space=smem, size = 0x4, offset = 0x4, fixed_abs, tag = 'smem constant byte address 0x4 - core index']
  #allocation1 [shape = 'u32[144,128]{1,0:T(1,128)}', space=vmem, size = 0x12000, scoped, tag = 'internal scratch']
  %s0 = inlined_call_operand.hbm [shape: f32[16,32], index: 0, kind: input, shape index: {}]
  %s1 = inlined_call_operand.hbm [shape: f32[3,32,32], index: 1, kind: input, shape index: {}]
  %s2 = inlined_call_operand.vmem [shape: f32[3,1,32], index: 2, kind: input, shape index: {}]
  %s3 = inlined_call_operand.hbm [shape: f32[3,16,32], index: 3, kind: output, shape index: {}]
  %s4 = sld [smem:[#allocation0]]
  $region53: #{tpu_custom_call.1} parent=0
    _
  %s6 = ssub.s32 1, %s4
  %s7 = scalar_select 0, %s6, %s4
  $region1: #{tpu_custom_call.1} parent=0
    #allocation2 [shape = 'u8[8192]{0}', space=vmem, size = 0x2000, scoped, tag = 'input window, operand 0, single buffered']
    #allocation3 [shape = 's32[2]{0}', space=sflag, size = 0x8, scoped, tag = 'scoped memory for tpu_custom_call.1']
    #allocation4 [shape = 's32[2]{0}', space=sflag, size = 0x8, scoped, tag = 'scoped memory for tpu_custom_call.1']
    #allocation5 [shape = 'u8[32768]{0}', space=vmem, size = 0x8000, scoped, tag = 'input window, operand 1']
    #allocation6 [shape = 's32[2]{0}', space=sflag, size = 0x8, scoped, tag = 'scoped memory for tpu_custom_call.1']
    #allocation7 [shape = 'u8[16384]{0}', space=vmem, size = 0x4000, scoped, tag = 'output window, operand 0']
    %8 = vsyncpa [#allocation3], 0
    %9 = vsyncpa [#allocation6], 0
    %s10 = scalar_lea.sflag [#allocation6], 1
    %11 = vsyncpa %s10, 0
    %12 = vsyncpa [#allocation4], 0
    %s13 = scalar_lea.sflag [#allocation4], 1
    %14 = vsyncpa %s13, 0
    loop: start=0, step=1, limit=5
    $region2: #{tpu_custom_call.1} parent=1 // loop_pre_header
      _
    $region3: #{tpu_custom_call.1} parent=1 // loop_header
      %s16 = sphi 0, %s20
      %p17 = scmp.ge.s32.totalorder %s16, 5
      %s23 = sphi 0, %s35
      %s24 = sphi 0, %s31
      %s25 = sphi 0, %s23
      %s26 = sphi 0, %s24
      %s27 = sphi 0, %s25
      %s28 = sphi 0, %s26
      %s38 = sphi 0, %s40
      %s41 = sphi 0, %s38
      %s42 = sphi 0, %s41
      %s58 = sphi 0, %s42
      %s64 = sphi 0, %s66
      %s67 = sphi 0, %s64
      %s68 = sphi 0, %s67
      %s84 = sphi 0, %s68
      %s90 = sphi 0, %s92
      %s93 = sphi 0, %s90
      %s94 = sphi 0, %s93
      %s110 = sphi 0, %s94
      %s118 = sphi 0, %s120
      %s121 = sphi 0, %s118
      %s122 = sphi 0, %s121
      %s138 = sphi 0, %s122
    $region4: #{tpu_custom_call.1} parent=1 // loop_header_branch
      %19 = sbr.rel (%p17) target = $region8
    $region5: #{tpu_custom_call.1} parent=1 // loop_body
      %s21 = ssub.s32 %s16, 1
      %s22 = ssub.s32 %s16, 2
      %s29 = sadd.s32 1, %s24
      %p30 = scmp.ge.s32.totalorder %s29, 3
      %s31 = scalar_select %p30, 0, %s29
      %s32 = sadd.s32 1, %s23
      %s33 = scalar_select %p30, %s32, %s23
      %p34 = scmp.ge.s32.totalorder %s33, 1
      %s35 = scalar_select %p34, 0, %s33
      %s36 = ssub.s32 %s23, %s35
      %p37 = scmp.eq.s32.totalorder %s36, 0
      %s39 = sadd.s32 %s38, 1
      %s40 = scalar_select %p37, %s38, %s39
      %p43 = pneg %p37
      %p44 = scmp.eq.s32.totalorder %s16, 2
      %p45 = por %p43, %p44
      %p46 = scmp.ne.s32.totalorder %s38, %s41
      %p47 = scmp.eq.s32.totalorder %s16, 0
      %p48 = por %p46, %p47
      %p49 = scmp.ne.s32.totalorder %s38, %s41
      %p50 = scmp.eq.s32.totalorder %s21, 2
      %p51 = por %p49, %p50
      %p52 = scmp.ne.s32.totalorder %s41, %s42
      %p53 = scmp.eq.s32.totalorder %s21, 0
      %p54 = por %p52, %p53
      %p55 = scmp.ne.s32.totalorder %s41, %s42
      %p56 = scmp.eq.s32.totalorder %s22, 2
      %p57 = por %p55, %p56
      %p59 = scmp.ne.s32.totalorder %s42, %s58
      %p60 = scmp.eq.s32.totalorder %s22, 0
      %p61 = por %p59, %p60
      %s62 = ssub.s32 %s24, %s31
      %p63 = scmp.eq.s32.totalorder %s62, 0
      %s65 = sadd.s32 %s64, 1
      %s66 = scalar_select %p63, %s64, %s65
      %p69 = pneg %p63
      %p70 = scmp.eq.s32.totalorder %s16, 2
      %p71 = por %p69, %p70
      %p72 = scmp.ne.s32.totalorder %s64, %s67
      %p73 = scmp.eq.s32.totalorder %s16, 0
      %p74 = por %p72, %p73
      %p75 = scmp.ne.s32.totalorder %s64, %s67
      %p76 = scmp.eq.s32.totalorder %s21, 2
      %p77 = por %p75, %p76
      %p78 = scmp.ne.s32.totalorder %s67, %s68
      %p79 = scmp.eq.s32.totalorder %s21, 0
      %p80 = por %p78, %p79
      %p81 = scmp.ne.s32.totalorder %s67, %s68
      %p82 = scmp.eq.s32.totalorder %s22, 2
      %p83 = por %p81, %p82
      %p85 = scmp.ne.s32.totalorder %s68, %s84
      %p86 = scmp.eq.s32.totalorder %s22, 0
      %p87 = por %p85, %p86
      %s88 = ssub.s32 %s24, %s31
      %p89 = scmp.eq.s32.totalorder %s88, 0
      %s91 = sadd.s32 %s90, 1
      %s92 = scalar_select %p89, %s90, %s91
      %p95 = pneg %p89
      %p96 = scmp.eq.s32.totalorder %s16, 2
      %p97 = por %p95, %p96
      %p98 = scmp.ne.s32.totalorder %s90, %s93
      %p99 = scmp.eq.s32.totalorder %s16, 0
      %p100 = por %p98, %p99
      %p101 = scmp.ne.s32.totalorder %s90, %s93
      %p102 = scmp.eq.s32.totalorder %s21, 2
      %p103 = por %p101, %p102
      %p104 = scmp.ne.s32.totalorder %s93, %s94
      %p105 = scmp.eq.s32.totalorder %s21, 0
      %p106 = por %p104, %p105
      %p107 = scmp.ne.s32.totalorder %s93, %s94
      %p108 = scmp.eq.s32.totalorder %s22, 2
      %p109 = por %p107, %p108
      %p111 = scmp.ne.s32.totalorder %s94, %s110
      %p112 = scmp.eq.s32.totalorder %s22, 0
      %p113 = por %p111, %p112
      %s114 = ssub.s32 %s24, %s31
      %s115 = ssub.s32 %s23, %s35
      %s116 = sor.u32 %s114, %s115
      %p117 = scmp.eq.s32.totalorder %s116, 0
      %s119 = sadd.s32 %s118, 1
      %s120 = scalar_select %p117, %s118, %s119
      %p123 = pneg %p117
      %p124 = scmp.eq.s32.totalorder %s16, 2
      %p125 = por %p123, %p124
      %p126 = scmp.ne.s32.totalorder %s118, %s121
      %p127 = scmp.eq.s32.totalorder %s16, 0
      %p128 = por %p126, %p127
      %p129 = scmp.ne.s32.totalorder %s118, %s121
      %p130 = scmp.eq.s32.totalorder %s21, 2
      %p131 = por %p129, %p130
      %p132 = scmp.ne.s32.totalorder %s121, %s122
      %p133 = scmp.eq.s32.totalorder %s21, 0
      %p134 = por %p132, %p133
      %p135 = scmp.ne.s32.totalorder %s121, %s122
      %p136 = scmp.eq.s32.totalorder %s22, 2
      %p137 = por %p135, %p136
      %p139 = scmp.ne.s32.totalorder %s122, %s138
      %p140 = scmp.eq.s32.totalorder %s22, 0
      %p141 = por %p139, %p140
      %p142 = scmp.le.s32.totalorder 1, %s16
      %p143 = scmp.lt.s32.totalorder %s16, 4
      %p144 = pnand %p142, %p143
      %p145 = pneg %p144
      // Predicated region
      $region9: #{tpu_custom_call.1} parent=5 // pred_check
        _
      $region10: #{tpu_custom_call.1} parent=5 // pred_check_branch
        %147 = sbr.rel (%p144) target = $region12
      $region11: #{tpu_custom_call.1} parent=5 // pred_region
        %s148 = ssub.s32 %s16, 1
        // Predicated region
        $region13: #{tpu_custom_call.1} parent=11 // pred_check
          %p149 = pneg %p54
        $region14: #{tpu_custom_call.1} parent=11 // pred_check_branch
          %151 = sbr.rel (%p149) target = $region16
        $region15: #{tpu_custom_call.1} parent=11 // pred_region
          %s152 = smul.u32 2, %s25
          %s154 = ssub.s32 256, 256
          %155 = vsyncadd [#allocation3], %s154
          %s156 = smul.addr %s152, 128
          %s157 = scalar_lea.hbm %s0, %s156
          %s158 = sshll.u32 [#allocation2], 4
          %s159 = int_to_ptr.vmem [resolvable:$true] %s158
          %164 = dma.hbm_to_vmem [thread:$0]  %s157, 256, %s159, [#allocation3], 128, 128, 8
        $region16: #{tpu_custom_call.1} parent=11 // pred_fallthru
          _
      $region12: #{tpu_custom_call.1} parent=5 // pred_fallthru
        _
      %p165 = scmp.lt.s32.totalorder %s16, 3
      // Predicated region
      $region17: #{tpu_custom_call.1} parent=5 // pred_check
        %p166 = pneg %p165
      $region18: #{tpu_custom_call.1} parent=5 // pred_check_branch
        %168 = sbr.rel (%p166) target = $region20
      $region19: #{tpu_custom_call.1} parent=5 // pred_region
        // Predicated region
        $region21: #{tpu_custom_call.1} parent=19 // pred_check
          %p169 = pneg %p74
        $region22: #{tpu_custom_call.1} parent=19 // pred_check_branch
          %171 = sbr.rel (%p169) target = $region24
        $region23: #{tpu_custom_call.1} parent=19 // pred_region
          %s172 = sand.u32 %s64, 1
          %s173 = scalar_lea.sflag [#allocation6], %s172
          %s174 = sand.u32 %s64, 1
          %s175 = smul.addr %s174, 32
          %s176 = scalar_lea.vmem [#allocation5], %s175
          %s178 = ssub.s32 512, 512
          %179 = vsyncadd %s173, %s178
          %s180 = smul.addr %s24, 4
          %s181 = smul.addr %s180, 128
          %s182 = scalar_lea.hbm %s1, %s181
          %s183 = sshll.u32 %s176, 4
          %s184 = int_to_ptr.vmem [resolvable:$true] %s183
          %189 = dma.hbm_to_vmem [thread:$0]  %s182, 512, %s184, %s173, 128, 128, 8
        $region24: #{tpu_custom_call.1} parent=19 // pred_fallthru
          _
        // Predicated region
        $region25: #{tpu_custom_call.1} parent=19 // pred_check
          %p190 = pneg %p100
        $region26: #{tpu_custom_call.1} parent=19 // pred_check_branch
          %192 = sbr.rel (%p190) target = $region28
        $region27: #{tpu_custom_call.1} parent=19 // pred_region
          %p193 = scmp.lt.s32.totalorder %s24, 2
          %s194 = scalar_select %p193, %s24, 2
          %s195 = scalar_lea.vmem %s2, %s194
        $region28: #{tpu_custom_call.1} parent=19 // pred_fallthru
          _
      $region20: #{tpu_custom_call.1} parent=5 // pred_fallthru
        _
      %p196 = scmp.le.s32.totalorder 1, %s16
      %p197 = scmp.lt.s32.totalorder %s16, 4
      %p198 = pnand %p196, %p197
      %p199 = pneg %p198
      // Predicated region
      $region29: #{tpu_custom_call.1} parent=5 // pred_check
        _
      $region30: #{tpu_custom_call.1} parent=5 // pred_check_branch
        %201 = sbr.rel (%p198) target = $region32
      $region31: #{tpu_custom_call.1} parent=5 // pred_region
        %s202 = ssub.s32 %s16, 1
        // Predicated region
        $region33: #{tpu_custom_call.1} parent=31 // pred_check
          %p203 = pneg %p54
        $region34: #{tpu_custom_call.1} parent=31 // pred_check_branch
          %205 = sbr.rel (%p203) target = $region36
        $region35: #{tpu_custom_call.1} parent=31 // pred_region
          %206 = dma.done [#allocation3], 256
        $region36: #{tpu_custom_call.1} parent=31 // pred_fallthru
          _
        %s207 = sand.u32 %s67, 1
        %s208 = scalar_lea.sflag [#allocation6], %s207
        %s209 = sand.u32 %s67, 1
        %s210 = smul.addr %s209, 32
        %s211 = scalar_lea.vmem [#allocation5], %s210
        // Predicated region
        $region37: #{tpu_custom_call.1} parent=31 // pred_check
          %p212 = pneg %p80
        $region38: #{tpu_custom_call.1} parent=31 // pred_check_branch
          %214 = sbr.rel (%p212) target = $region40
        $region39: #{tpu_custom_call.1} parent=31 // pred_region
          %215 = dma.done %s208, 512
        $region40: #{tpu_custom_call.1} parent=31 // pred_fallthru
          _
        %p216 = pneg %p54
        %p217 = pneg %p51
        %s218 = sand.u32 %s67, 1
        %s219 = scalar_lea.sflag [#allocation6], %s218
        %s220 = sand.u32 %s67, 1
        %s221 = smul.addr %s220, 32
        %s222 = scalar_lea.vmem [#allocation5], %s221
        %p223 = pneg %p80
        %p224 = pneg %p77
        %p225 = scmp.lt.s32.totalorder %s26, 2
        %s226 = scalar_select %p225, %s26, 2
        %s227 = scalar_lea.vmem %s2, %s226
        %p228 = pneg %p106
        %p229 = pneg %p103
        %p230 = pneg %p134
        %p231 = pneg %p131
        %s232 = sand.u32 %s121, 1
        %s233 = scalar_lea.sflag [#allocation4], %s232
        %s234 = sand.u32 %s121, 1
        %s235 = smul.addr %s234, 16
        %s236 = scalar_lea.vmem [#allocation7], %s235
        %s237 = smul.u32 2, %s25
        %p238 = scmp.lt.s32.totalorder %s26, 2
        %s239 = scalar_select %p238, %s26, 2
        %s240 = scalar_lea.vmem %s2, %s239
        %s241 = smul.u32 2, %s25
        %v242 = vld [vmem:[#allocation2] sm:$0xff]
        %v243 = vld [vmem:[#allocation2 + $0x8] sm:$0xff]
        %v244 = vld [vmem:[%s211] sm:$0xff]
        %v245 = vld [vmem:[%s211 + $0x8] sm:$0xff]
        %v246 = vld [vmem:[%s211 + $0x10] sm:$0xff]
        %v247 = vld [vmem:[%s211 + $0x18] sm:$0xff]
        %v248 = vld [vmem:[%s240] sm:$0x1]
        %v250 = vlaneseq
        %v251 = vshrl.u32 %v250, 7
        %v252 = vsub.s32 0, %v251
        %v253 = vrot.slane %v248, %v252
        %vm255 = vcmask 261120
        %v257 = vsel %vm255, %v242, 0
        %v260 = vsel %vm255, %v243, 0
        %v263 = vsel %vm255, %v244, 0
        %v266 = vsel %vm255, %v245, 0
        %v269 = vsel %vm255, %v246, 0
        %v272 = vsel %vm255, %v247, 0
        %274 = vmatprep.subr.mxu0 0.0
        %275 = vmatpush1.xpose.msra.mxu0 %v263
        %276 = vmatprep.subr.mxu0 0.0
        %277 = vmatpush1.xpose.msra.mxu0 %v266
        %278 = vmatprep.subr.mxu0 0.0
        %279 = vmatpush1.xpose.msra.mxu0 %v269
        %280 = vmatprep.subr.mxu0 0.0
        %281 = vmatpush1.xpose.msra.mxu0 %v272
        %282 = vmatprep.subr.mxu0 0.0
        %283 = vmatpush1.xpose.msra.mxu0 0.0
        %284 = vmatprep.subr.mxu0 0.0
        %285 = vmatpush1.xpose.msra.mxu0 0.0
        %286 = vmatprep.subr.mxu0 0.0
        %287 = vmatpush1.xpose.msra.mxu0 0.0
        %288 = vmatprep.subr.mxu0 0.0
        %289 = vmatpush1.xpose.msra.mxu0 0.0
        %290 = vmatprep.subr.mxu0 0.0
        %291 = vmatpush1.xpose.msra.mxu0 0.0
        %292 = vmatprep.subr.mxu0 0.0
        %293 = vmatpush1.xpose.msra.mxu0 0.0
        %294 = vmatprep.subr.mxu0 0.0
        %295 = vmatpush1.xpose.msra.mxu0 0.0
        %296 = vmatprep.subr.mxu0 0.0
        %297 = vmatpush1.xpose.msra.mxu0 0.0
        %298 = vmatprep.subr.mxu0 0.0
        %299 = vmatpush1.xpose.msra.mxu0 0.0
        %300 = vmatprep.subr.mxu0 0.0
        %301 = vmatpush1.xpose.msra.mxu0 0.0
        %302 = vmatprep.subr.mxu0 0.0
        %303 = vmatpush1.xpose.msra.mxu0 0.0
        %304 = vmatprep.subr.mxu0 0.0
        %305 = vmatpush1.xpose.msra.mxu0 0.0
        %306 = vmatprep.subr.mxu0 0.0
        %307 = vmatpush1.xpose.msra.mxu0 0.0
        %308 = vmatprep.subr.mxu0 0.0
        %309 = vmatpush1.xpose.msra.mxu0 0.0
        %310 = vmatprep.subr.mxu0 0.0
        %311 = vmatpush1.xpose.msra.mxu0 0.0
        %312 = vmatprep.subr.mxu0 0.0
        %313 = vmatpush1.xpose.msra.mxu0 0.0
        %314 = vmatprep.subr.mxu0 0.0
        %315 = vmatpush1.xpose.msra.mxu0 0.0
        %316 = vmatprep.subr.mxu0 0.0
        %317 = vmatpush1.xpose.msra.mxu0 0.0
        %318 = vmatprep.subr.mxu0 0.0
        %319 = vmatpush1.xpose.msra.mxu0 0.0
        %320 = vmatprep.subr.mxu0 0.0
        %321 = vmatpush1.xpose.msra.mxu0 0.0
        %322 = vmatprep.subr.mxu0 0.0
        %323 = vmatpush1.xpose.msra.mxu0 0.0
        %324 = vmatprep.subr.mxu0 0.0
        %325 = vmatpush1.xpose.msra.mxu0 0.0
        %326 = vmatprep.subr.mxu0 0.0
        %327 = vmatpush1.xpose.msra.mxu0 0.0
        %328 = vmatprep.subr.mxu0 0.0
        %329 = vmatpush1.xpose.msra.mxu0 0.0
        %330 = vmatprep.subr.mxu0 0.0
        %331 = vmatpush1.xpose.msra.mxu0 0.0
        %332 = vmatprep.subr.mxu0 0.0
        %333 = vmatpush1.xpose.msra.mxu0 0.0
        %334 = vmatprep.subr.mxu0 0.0
        %335 = vmatpush1.xpose.msra.mxu0 0.0
        %336 = vmatprep.subr.mxu0 0.0
        %337 = vmatpush1.xpose.msra.mxu0 0.0
        %338 = vmatprep.mubr.f32.mxu0 0.0
        %339 = vmatmul.mubr.f32.gmra.mrb[0].mxu0 %v257
        %v340 = vpop.f32.mrb[0].mxu0
        %v341 = vadd.f32 %v253, %v340
        %v342 = vpop.f32.mrb[0].mxu0
        %343 = vmatprep.mubr.f32.mxu0 0.0
        %344 = vmatmul.mubr.f32.gmra.mrb[0].mxu0 %v260
        %v345 = vpop.f32.mrb[0].mxu0
        %v346 = vadd.f32 %v253, %v345
        %v347 = vpop.f32.mrb[0].mxu0
        %348 = vdwg.mxu0
        %349 = vst.msk [vmem:[%s236] sm:$0xff] %vm255, %v341
        %350 = vst.msk [vmem:[%s236 + $0x8] sm:$0xff] %vm255, %v346
        %s351 = sand.u32 %s121, 1
        %s352 = scalar_lea.sflag [#allocation4], %s351
        %s353 = sand.u32 %s121, 1
        %s354 = smul.addr %s353, 16
        %s355 = scalar_lea.vmem [#allocation7], %s354
        // Predicated region
        $region41: #{tpu_custom_call.1} parent=31 // pred_check
          %p356 = pneg %p131
        $region42: #{tpu_custom_call.1} parent=31 // pred_check_branch
          %358 = sbr.rel (%p356) target = $region44
        $region43: #{tpu_custom_call.1} parent=31 // pred_region
          %s359 = smul.u32 2, %s25
          %s361 = ssub.s32 256, 256
          %362 = vsyncadd %s352, %s361
          %s363 = smul.addr %s26, 2
          %s364 = sadd.s32 %s359, %s363
          %s365 = smul.addr %s364, 128
          %s366 = scalar_lea.hbm %s3, %s365
          %s367 = sshll.u32 %s355, 4
          %s368 = int_to_ptr.vmem [resolvable:$true] %s367
          %373 = dma.vmem_to_hbm [thread:$0]  %s368, 256, %s366, %s352, 128, 128, 8
        $region44: #{tpu_custom_call.1} parent=31 // pred_fallthru
          _
      $region32: #{tpu_custom_call.1} parent=5 // pred_fallthru
        _
      %p374 = scmp.le.s32.totalorder 2, %s16
      // Predicated region
      $region45: #{tpu_custom_call.1} parent=5 // pred_check
        %p375 = pneg %p374
      $region46: #{tpu_custom_call.1} parent=5 // pred_check_branch
        %377 = sbr.rel (%p375) target = $region48
      $region47: #{tpu_custom_call.1} parent=5 // pred_region
        %s378 = ssub.s32 %s16, 2
        // Predicated region
        $region49: #{tpu_custom_call.1} parent=47 // pred_check
          %p379 = pneg %p137
        $region50: #{tpu_custom_call.1} parent=47 // pred_check_branch
          %381 = sbr.rel (%p379) target = $region52
        $region51: #{tpu_custom_call.1} parent=47 // pred_region
          %s382 = sand.u32 %s122, 1
          %s383 = scalar_lea.sflag [#allocation4], %s382
          %s384 = sand.u32 %s122, 1
          %s385 = smul.addr %s384, 16
          %s386 = scalar_lea.vmem [#allocation7], %s385
          %387 = dma.done %s383, 256
        $region52: #{tpu_custom_call.1} parent=47 // pred_fallthru
          _
      $region48: #{tpu_custom_call.1} parent=5 // pred_fallthru
        _
    $region6: #{tpu_custom_call.1} parent=1 // loop_footer
      %s20 = sadd.s32 1, %s16
    $region7: #{tpu_custom_call.1} parent=1 // loop_footer_branch
      %15 = sbr.rel target = $region3
    $region8: #{tpu_custom_call.1} parent=1 // loop_exit
      _
    %388 = vsyncpa [#allocation3], 1
    %s389 = scalar_lea.sflag [#allocation3], 1
    %390 = vsyncpa %s389, 1
    %391 = vsyncpa [#allocation6], 1
    %s392 = scalar_lea.sflag [#allocation6], 1
    %393 = vsyncpa %s392, 1
    %394 = vsyncpa [#allocation4], 1
    %s395 = scalar_lea.sflag [#allocation4], 1
    %396 = vsyncpa %s395, 1

</llo_original>
